<compile_context>
chip_gen: v7x
topology: tpu7x:2x2x1
jax: 0.10.0
libtpu: 0.0.40
codegen_flags: <defaults>
</compile_context>

<pallas_src>
import functools

import jax
import jax.numpy as jnp
from jax.experimental import pallas as pl
from jax.experimental.pallas import tpu as pltpu


LANE = 128      # vreg lane width
SUBLANE = 8     # vreg sublane count (f32)


def _round_up(x, m):
    return (x + m - 1) // m * m


def _pad2d(a, rows, cols):
    r, c = a.shape
    return jnp.pad(a, ((0, rows - r), (0, cols - c)))


# ----------------------------- Pallas kernel ------------------------------

def _fc_block_kernel(x_ref, w1_ref, b1_ref, w2_ref, b2_ref, w3_ref, b3_ref,
                     o_ref, *, out_dim):
    """relu(x@w1+b1) -> relu(.@w2+b2) -> .@w3+b3, all in VMEM, one kernel.

    Weights are (in, out), lane-padded, possibly bf16; biases are f32 (1, N).
    Matmuls accumulate in f32; bias-add / ReLU stay f32 (v5e-friendly).
    """
    cdt = w1_ref.dtype                     # compute dtype (bf16 or f32)
    h = jnp.dot(x_ref[...].astype(cdt), w1_ref[...],
                preferred_element_type=jnp.float32)
    h = jnp.maximum(h + b1_ref[...], 0.0)
    h = jnp.dot(h.astype(cdt), w2_ref[...],
                preferred_element_type=jnp.float32)
    h = jnp.maximum(h + b2_ref[...], 0.0)
    h = jnp.dot(h.astype(cdt), w3_ref[...],
                preferred_element_type=jnp.float32)
    h = h + b3_ref[...]
    # Store only the real output columns (masked lane store; padded weight
    # columns are identically zero so nothing of value is dropped).
    o_ref[...] = h[:, :out_dim].astype(o_ref.dtype)


@functools.partial(jax.jit, static_argnames=("out_dim", "block_m"))
def fc_block_forward(packed, x, *, out_dim, block_m=256):
    """Fused FCBlock forward.

    `packed` holds pre-transposed (in, out) weights (bf16 or f32) zero-padded
    to 128-lane multiples, and f32 (1, N) biases with matching padding.
    """
    assert block_m % SUBLANE == 0
    w1, b1 = packed["w1"], packed["b1"]
    w2, b2 = packed["w2"], packed["b2"]
    w3, b3 = packed["w3"], packed["b3"]

    B, D = x.shape
    assert w1.shape[0] == D

    if B <= block_m:
        # Small/medium batch: a single block covering the whole array.  Block
        # dims equal to the full array dims satisfy the layout rule, so no
        # wrapper-side pad of x and no output slice are needed at all.
        tm, mp, grid_m = B, B, 1
        xp = x
    else:
        # Large batch: tile the row axis.  block_m=256 fills the 256-wide MXU
        # on v6e/v7x in one pass and keeps the grid >= 2 for B >= 512 so the
        # "parallel" axis can shard across v7x's two TensorCores.
        tm = block_m
        mp = _round_up(B, tm)
        grid_m = mp // tm
        xp = jnp.pad(x, ((0, mp - B), (0, 0)))

    kernel = functools.partial(_fc_block_kernel, out_dim=out_dim)

    out = pl.pallas_call(
        kernel,
        out_shape=jax.ShapeDtypeStruct((mp, out_dim), x.dtype),
        grid=(grid_m,),
        in_specs=[
            pl.BlockSpec((tm, D), lambda i: (i, 0)),       # x row tile (streams)
            pl.BlockSpec(w1.shape, lambda i: (0, 0)),      # fc1 weight (resident)
            pl.BlockSpec(b1.shape, lambda i: (0, 0)),      # fc1 bias
            pl.BlockSpec(w2.shape, lambda i: (0, 0)),      # fc2 weight
            pl.BlockSpec(b2.shape, lambda i: (0, 0)),      # fc2 bias
            pl.BlockSpec(w3.shape, lambda i: (0, 0)),      # fc3 weight
            pl.BlockSpec(b3.shape, lambda i: (0, 0)),      # fc3 bias
        ],
        out_specs=pl.BlockSpec((tm, out_dim), lambda i: (i, 0)),
        compiler_params=pltpu.CompilerParams(
            dimension_semantics=("parallel",)),
    )(xp, w1, b1, w2, b2, w3, b3)

    # Drop padded batch rows only when padding actually happened (padded rows
    # hold relu(b1)-derived garbage and must not escape).
    return out if mp == B else out[:B]


# --------------------------- parameter handling ----------------------------

def _uniform(key, shape, fan_in):
    bound = 1.0 / (fan_in ** 0.5)
    return jax.random.uniform(key, shape, jnp.float32, -bound, bound)


def init_params(key, input_dim=400, hidden_dims=(120, 84), output_dim=10):
    """Torch-layout params: Linear weight is (out, in), bias is (out,)."""
    ks = jax.random.split(key, 6)
    h1, h2 = hidden_dims
    return {
        "fc1_w": _uniform(ks[0], (h1, input_dim), input_dim),
        "fc1_b": _uniform(ks[1], (h1,), input_dim),
        "fc2_w": _uniform(ks[2], (h2, h1), h1),
        "fc2_b": _uniform(ks[3], (h2,), h1),
        "fc3_w": _uniform(ks[4], (output_dim, h2), h2),
        "fc3_b": _uniform(ks[5], (output_dim,), h2),
    }


def pack_fc_params(params, compute_dtype=jnp.bfloat16):
    """One-time prep: transpose weights to (in, out), cast to compute_dtype
    (bf16 halves weight DMA and hits the native MXU path on v6e/v7x), and
    zero-pad every hidden/output width up to a multiple of 128 lanes.  Zero
    padding keeps the extra lanes identically zero through every layer.
    Biases stay f32 so bias-add/ReLU run in f32 on every generation."""
    w1 = params["fc1_w"].T.astype(compute_dtype)   # (D, H1)
    w2 = params["fc2_w"].T.astype(compute_dtype)   # (H1, H2)
    w3 = params["fc3_w"].T.astype(compute_dtype)   # (H2, N)
    D, H1 = w1.shape
    H2 = w2.shape[1]
    N = w3.shape[1]
    H1p, H2p, Np = (_round_up(d, LANE) for d in (H1, H2, N))
    return {
        "w1": _pad2d(w1, D, H1p),
        "b1": _pad2d(params["fc1_b"].reshape(1, -1).astype(jnp.float32), 1, H1p),
        "w2": _pad2d(w2, H1p, H2p),
        "b2": _pad2d(params["fc2_b"].reshape(1, -1).astype(jnp.float32), 1, H2p),
        "w3": _pad2d(w3, H2p, Np),
        "b3": _pad2d(params["fc3_b"].reshape(1, -1).astype(jnp.float32), 1, Np),
    }


# ------------------------------- reference ---------------------------------

def fc_block_reference(params, x, compute_dtype=jnp.float32):
    """Pure-jnp reference.  compute_dtype=bf16 mirrors the kernel's weight
    quantization (tight check); compute_dtype=f32 is the exact module math."""
    if compute_dtype == jnp.float32:
        mm = functools.partial(jnp.dot, precision=jax.lax.Precision.HIGHEST)
        cast = lambda a: a
    else:
        mm = functools.partial(jnp.dot, preferred_element_type=jnp.float32)
        cast = lambda a: a.astype(compute_dtype)
    h = jnp.maximum(mm(cast(x), cast(params["fc1_w"]).T) + params["fc1_b"], 0.0)
    h = jnp.maximum(mm(cast(h), cast(params["fc2_w"]).T) + params["fc2_b"], 0.0)
    return mm(cast(h), cast(params["fc3_w"]).T) + params["fc3_b"]


# ---------------------------------- main ------------------------------------

if __name__ == "__main__":
    key = jax.random.PRNGKey(0)
    k_x, k_p, k_x2 = jax.random.split(key, 3)

    # FCBlock as used in label-skew: input_dim=400 (=16*5*5), hidden=(120, 84),
    # 10 classes, tiny batch.
    batch, input_dim, hidden_dims, output_dim = 2, 400, (120, 84), 10

    x = jax.random.normal(k_x, (batch, input_dim), jnp.float32)
    params = init_params(k_p, input_dim, hidden_dims, output_dim)
    packed = pack_fc_params(params, compute_dtype=jnp.bfloat16)

    # --- small-batch fast path (B=2): no pad, no slice, single grid step ----
    out = jax.block_until_ready(fc_block_forward(packed, x, out_dim=output_dim))
    assert out.shape == (batch, output_dim), out.shape
    assert bool(jnp.all(jnp.isfinite(out)))

    # Tight check against a reference using the SAME bf16 weight quantization.
    ref_q = jax.block_until_ready(
        fc_block_reference(params, x, compute_dtype=jnp.bfloat16))
    max_err_q = float(jnp.max(jnp.abs(out - ref_q)))
    assert bool(jnp.allclose(out, ref_q, rtol=2e-3, atol=2e-3)), (
        f"Pallas output mismatch vs bf16-matched reference, max |err| = {max_err_q}")

    # Informational drift vs the exact f32 module math (bf16 weight rounding).
    ref_f32 = fc_block_reference(params, x, compute_dtype=jnp.float32)
    _ = float(jnp.max(jnp.abs(out - ref_f32)))

    # --- tiled large-batch path: exercises row padding + parallel grid ------
    batch2 = 260
    x2 = jax.random.normal(k_x2, (batch2, input_dim), jnp.float32)
    out2 = jax.block_until_ready(
        fc_block_forward(packed, x2, out_dim=output_dim, block_m=128))
    assert out2.shape == (batch2, output_dim), out2.shape
    ref2_q = fc_block_reference(params, x2, compute_dtype=jnp.bfloat16)
    max_err2 = float(jnp.max(jnp.abs(out2 - ref2_q)))
    assert bool(jnp.allclose(out2, ref2_q, rtol=2e-3, atol=2e-3)), (
        f"Tiled-path mismatch vs bf16-matched reference, max |err| = {max_err2}")

    print("KERNEL_OK")
</pallas_src>

<mosaic_0001>
module attributes {stable_mosaic.version = 11 : i64} {
  func.func @_fc_block_kernel(%arg0: i32, %arg1: memref<2x400xf32, #tpu.memory_space<vmem>>, %arg2: memref<400x128xbf16, #tpu.memory_space<vmem>>, %arg3: memref<1x128xf32, #tpu.memory_space<vmem>>, %arg4: memref<128x128xbf16, #tpu.memory_space<vmem>>, %arg5: memref<1x128xf32, #tpu.memory_space<vmem>>, %arg6: memref<128x128xbf16, #tpu.memory_space<vmem>>, %arg7: memref<1x128xf32, #tpu.memory_space<vmem>>, %arg8: memref<2x10xf32, #tpu.memory_space<vmem>>) attributes {dimension_semantics = [#tpu.dimension_semantics<parallel>], iteration_bounds = array<i64: 1>, scalar_prefetch = 0 : i64, scratch_operands = 0 : i64, tpu.core_type = #tpu.core_type<tc>, window_params = [{transform_indices = @transform_0, window_bounds = array<i64: 2, 400>}, {pipeline_mode = #tpu.pipeline_mode<synchronous>, transform_indices = @transform_1, window_bounds = array<i64: 400, 128>}, {pipeline_mode = #tpu.pipeline_mode<synchronous>, transform_indices = @transform_2, window_bounds = array<i64: 1, 128>}, {pipeline_mode = #tpu.pipeline_mode<synchronous>, transform_indices = @transform_3, window_bounds = array<i64: 128, 128>}, {pipeline_mode = #tpu.pipeline_mode<synchronous>, transform_indices = @transform_4, window_bounds = array<i64: 1, 128>}, {pipeline_mode = #tpu.pipeline_mode<synchronous>, transform_indices = @transform_5, window_bounds = array<i64: 128, 128>}, {pipeline_mode = #tpu.pipeline_mode<synchronous>, transform_indices = @transform_6, window_bounds = array<i64: 1, 128>}, {transform_indices = @transform_7, window_bounds = array<i64: 2, 10>}]} {
    %c0 = arith.constant 0 : index
    %c0_0 = arith.constant 0 : index
    %0 = vector.load %arg1[%c0, %c0_0] : memref<2x400xf32, #tpu.memory_space<vmem>>, vector<2x400xf32>
    %1 = arith.truncf %0 : vector<2x400xf32> to vector<2x400xbf16>
    %c0_1 = arith.constant 0 : index
    %c0_2 = arith.constant 0 : index
    %2 = vector.load %arg2[%c0_1, %c0_2] : memref<400x128xbf16, #tpu.memory_space<vmem>>, vector<400x128xbf16>
    %cst = arith.constant dense<0.000000e+00> : vector<2x128xf32>
    %3 = tpu.matmul %1, %2, %cst {dimension_numbers = #tpu.dot_dimension_numbers<[1], [0], [0], [1], [0, 0, 1, 1], [], []>} : vector<2x400xbf16>, vector<400x128xbf16>, vector<2x128xf32> -> vector<2x128xf32>
    %c0_3 = arith.constant 0 : index
    %c0_4 = arith.constant 0 : index
    %4 = vector.load %arg3[%c0_3, %c0_4] : memref<1x128xf32, #tpu.memory_space<vmem>>, vector<1x128xf32>
    %5 = vector.broadcast %4 : vector<1x128xf32> to vector<2x128xf32>
    %6 = arith.addf %3, %5 : vector<2x128xf32>
    %cst_5 = arith.constant 0.000000e+00 : f32
    %7 = vector.broadcast %cst_5 : f32 to vector<2x128xf32>
    %8 = arith.maximumf %6, %7 : vector<2x128xf32>
    %9 = arith.truncf %8 : vector<2x128xf32> to vector<2x128xbf16>
    %c0_6 = arith.constant 0 : index
    %c0_7 = arith.constant 0 : index
    %10 = vector.load %arg4[%c0_6, %c0_7] : memref<128x128xbf16, #tpu.memory_space<vmem>>, vector<128x128xbf16>
    %cst_8 = arith.constant dense<0.000000e+00> : vector<2x128xf32>
    %11 = tpu.matmul %9, %10, %cst_8 {dimension_numbers = #tpu.dot_dimension_numbers<[1], [0], [0], [1], [0, 0, 1, 1], [], []>} : vector<2x128xbf16>, vector<128x128xbf16>, vector<2x128xf32> -> vector<2x128xf32>
    %c0_9 = arith.constant 0 : index
    %c0_10 = arith.constant 0 : index
    %12 = vector.load %arg5[%c0_9, %c0_10] : memref<1x128xf32, #tpu.memory_space<vmem>>, vector<1x128xf32>
    %13 = vector.broadcast %12 : vector<1x128xf32> to vector<2x128xf32>
    %14 = arith.addf %11, %13 : vector<2x128xf32>
    %cst_11 = arith.constant 0.000000e+00 : f32
    %15 = vector.broadcast %cst_11 : f32 to vector<2x128xf32>
    %16 = arith.maximumf %14, %15 : vector<2x128xf32>
    %17 = arith.truncf %16 : vector<2x128xf32> to vector<2x128xbf16>
    %c0_12 = arith.constant 0 : index
    %c0_13 = arith.constant 0 : index
    %18 = vector.load %arg6[%c0_12, %c0_13] : memref<128x128xbf16, #tpu.memory_space<vmem>>, vector<128x128xbf16>
    %cst_14 = arith.constant dense<0.000000e+00> : vector<2x128xf32>
    %19 = tpu.matmul %17, %18, %cst_14 {dimension_numbers = #tpu.dot_dimension_numbers<[1], [0], [0], [1], [0, 0, 1, 1], [], []>} : vector<2x128xbf16>, vector<128x128xbf16>, vector<2x128xf32> -> vector<2x128xf32>
    %c0_15 = arith.constant 0 : index
    %c0_16 = arith.constant 0 : index
    %20 = vector.load %arg7[%c0_15, %c0_16] : memref<1x128xf32, #tpu.memory_space<vmem>>, vector<1x128xf32>
    %21 = vector.broadcast %20 : vector<1x128xf32> to vector<2x128xf32>
    %22 = arith.addf %19, %21 : vector<2x128xf32>
    %23 = vector.extract_strided_slice %22 {offsets = [0, 0], sizes = [2, 10], strides = [1, 1]} : vector<2x128xf32> to vector<2x10xf32>
    %c0_17 = arith.constant 0 : index
    %c0_18 = arith.constant 0 : index
    %24 = vector.load %arg8[%c0_17, %c0_18] : memref<2x10xf32, #tpu.memory_space<vmem>>, vector<2x10xf32>
    tpu.vector_store %arg8[%c0_17, %c0_18], %23 {strides = array<i32>} : memref<2x10xf32, #tpu.memory_space<vmem>>, vector<2x10xf32>,
    return
  }
  func.func @transform_0(%arg0: i32) -> (i32, i32) {
    %c0_i32 = arith.constant 0 : i32
    %c0_i32_0 = arith.constant 0 : i32
    return %arg0, %c0_i32 : i32, i32
  }
  func.func @transform_1(%arg0: i32) -> (i32, i32) {
    %c0_i32 = arith.constant 0 : i32
    %c0_i32_0 = arith.constant 0 : i32
    %c0_i32_1 = arith.constant 0 : i32
    return %c0_i32, %c0_i32_0 : i32, i32
  }
  func.func @transform_2(%arg0: i32) -> (i32, i32) {
    %c0_i32 = arith.constant 0 : i32
    %c0_i32_0 = arith.constant 0 : i32
    %c0_i32_1 = arith.constant 0 : i32
    return %c0_i32, %c0_i32_0 : i32, i32
  }
  func.func @transform_3(%arg0: i32) -> (i32, i32) {
    %c0_i32 = arith.constant 0 : i32
    %c0_i32_0 = arith.constant 0 : i32
    %c0_i32_1 = arith.constant 0 : i32
    return %c0_i32, %c0_i32_0 : i32, i32
  }
  func.func @transform_4(%arg0: i32) -> (i32, i32) {
    %c0_i32 = arith.constant 0 : i32
    %c0_i32_0 = arith.constant 0 : i32
    %c0_i32_1 = arith.constant 0 : i32
    return %c0_i32, %c0_i32_0 : i32, i32
  }
  func.func @transform_5(%arg0: i32) -> (i32, i32) {
    %c0_i32 = arith.constant 0 : i32
    %c0_i32_0 = arith.constant 0 : i32
    %c0_i32_1 = arith.constant 0 : i32
    return %c0_i32, %c0_i32_0 : i32, i32
  }
  func.func @transform_6(%arg0: i32) -> (i32, i32) {
    %c0_i32 = arith.constant 0 : i32
    %c0_i32_0 = arith.constant 0 : i32
    %c0_i32_1 = arith.constant 0 : i32
    return %c0_i32, %c0_i32_0 : i32, i32
  }
  func.func @transform_7(%arg0: i32) -> (i32, i32) {
    %c0_i32 = arith.constant 0 : i32
    %c0_i32_0 = arith.constant 0 : i32
    return %arg0, %c0_i32 : i32, i32
  }
}

</mosaic_0001>

<llo_original>
// kernel: fc_block_forward.1
$region0: #{fc_block_forward.1}
  #allocation0 [shape = 'u32[]', space=smem, size = 0x4, offset = 0x4, fixed_abs, tag = 'smem constant byte address 0x4 - core index']
  #allocation1 [shape = 'u32[144,128]{1,0:T(1,128)}', space=vmem, size = 0x12000, scoped, tag = 'internal scratch']
  %s0 = inlined_call_operand.vmem [shape: f32[2,400], index: 0, kind: input, shape index: {}]
  %s1 = inlined_call_operand.hbm [shape: bf16[400,128], index: 1, kind: input, shape index: {}]
  %s2 = inlined_call_operand.hbm [shape: f32[1,128], index: 2, kind: input, shape index: {}]
  %s3 = inlined_call_operand.hbm [shape: bf16[128,128], index: 3, kind: input, shape index: {}]
  %s4 = inlined_call_operand.vmem [shape: f32[1,128], index: 4, kind: input, shape index: {}]
  %s5 = inlined_call_operand.hbm [shape: bf16[128,128], index: 5, kind: input, shape index: {}]
  %s6 = inlined_call_operand.vmem [shape: f32[1,128], index: 6, kind: input, shape index: {}]
  %s7 = inlined_call_operand.hbm [shape: f32[2,10], index: 7, kind: output, shape index: {}]
  %s8 = sld [smem:[#allocation0]]
  $region54: #{fc_block_forward.1} parent=0
    _
  %s10 = ssub.s32 1, %s8
  %s11 = scalar_select 0, %s10, %s8
  $region1: #{fc_block_forward.1} parent=0
    #allocation2 [shape = 'u8[102400]{0}', space=vmem, size = 0x19000, scoped, tag = 'input window, operand 1, single buffered']
    #allocation3 [shape = 's32[1]{0}', space=sflag, size = 0x4, scoped, tag = 'scoped memory for fc_block_forward.1']
    #allocation4 [shape = 's32[1]{0}', space=sflag, size = 0x4, scoped, tag = 'scoped memory for fc_block_forward.1']
    #allocation5 [shape = 'u8[512]{0}', space=vmem, size = 0x400, scoped, tag = 'input window, operand 2, single buffered']
    #allocation6 [shape = 's32[1]{0}', space=sflag, size = 0x4, scoped, tag = 'scoped memory for fc_block_forward.1']
    #allocation7 [shape = 'u8[32768]{0}', space=vmem, size = 0x8000, scoped, tag = 'input window, operand 3, single buffered']
    #allocation8 [shape = 'u8[32768]{0}', space=vmem, size = 0x8000, scoped, tag = 'input window, operand 5, single buffered']
    #allocation9 [shape = 's32[1]{0}', space=sflag, size = 0x4, scoped, tag = 'scoped memory for fc_block_forward.1']
    #allocation10 [shape = 'u8[1024]{0}', space=vmem, size = 0x400, scoped, tag = 'output window, operand 0, single buffered']
    %12 = vsyncpa [#allocation3], 0
    %13 = vsyncpa [#allocation6], 0
    %14 = vsyncpa [#allocation9], 0
    %15 = vsyncpa [#allocation4], 0
    // Predicated region
    $region2: #{fc_block_forward.1} parent=1 // pred_check
      _
    $region3: #{fc_block_forward.1} parent=1 // pred_check_branch
      %17 = sbr.rel (0) target = $region5
    $region4: #{fc_block_forward.1} parent=1 // pred_region
      _
    $region5: #{fc_block_forward.1} parent=1 // pred_fallthru
      _
    // Predicated region
    $region6: #{fc_block_forward.1} parent=1 // pred_check
      _
    $region7: #{fc_block_forward.1} parent=1 // pred_check_branch
      %19 = sbr.rel (0) target = $region9
    $region8: #{fc_block_forward.1} parent=1 // pred_region
      %s21 = ssub.s32 3200, 3200
      %22 = vsyncadd [#allocation3], %s21
      %s23 = sshll.u32 [#allocation2], 4
      %s24 = int_to_ptr.vmem [resolvable:$true] %s23
      %29 = dma.hbm_to_vmem [thread:$0]  %s1, 3200, %s24, [#allocation3], 64, 64, 4
    $region9: #{fc_block_forward.1} parent=1 // pred_fallthru
      _
    // Predicated region
    $region10: #{fc_block_forward.1} parent=1 // pred_check
      _
    $region11: #{fc_block_forward.1} parent=1 // pred_check_branch
      %31 = sbr.rel (0) target = $region13
    $region12: #{fc_block_forward.1} parent=1 // pred_region
      %s33 = ssub.s32 16, 16
      %34 = vsyncadd [#allocation6], %s33
      %s36 = sshll.u32 [#allocation5], 4
      %s37 = int_to_ptr.vmem [resolvable:$true] %s36
      %39 = dma.hbm_to_vmem [thread:$0]  %s2, 16, %s37, [#allocation6]
    $region13: #{fc_block_forward.1} parent=1 // pred_fallthru
      _
    // Predicated region
    $region14: #{fc_block_forward.1} parent=1 // pred_check
      _
    $region15: #{fc_block_forward.1} parent=1 // pred_check_branch
      %41 = sbr.rel (0) target = $region17
    $region16: #{fc_block_forward.1} parent=1 // pred_region
      %s43 = ssub.s32 1024, 1024
      %44 = vsyncadd [#allocation6], %s43
      %s45 = sshll.u32 [#allocation7], 4
      %s46 = int_to_ptr.vmem [resolvable:$true] %s45
      %51 = dma.hbm_to_vmem [thread:$0]  %s3, 1024, %s46, [#allocation6], 64, 64, 4
    $region17: #{fc_block_forward.1} parent=1 // pred_fallthru
      _
    // Predicated region
    $region18: #{fc_block_forward.1} parent=1 // pred_check
      _
    $region19: #{fc_block_forward.1} parent=1 // pred_check_branch
      %53 = sbr.rel (0) target = $region21
    $region20: #{fc_block_forward.1} parent=1 // pred_region
      _
    $region21: #{fc_block_forward.1} parent=1 // pred_fallthru
      _
    // Predicated region
    $region22: #{fc_block_forward.1} parent=1 // pred_check
      _
    $region23: #{fc_block_forward.1} parent=1 // pred_check_branch
      %55 = sbr.rel (0) target = $region25
    $region24: #{fc_block_forward.1} parent=1 // pred_region
      %s57 = ssub.s32 1024, 1024
      %58 = vsyncadd [#allocation9], %s57
      %s59 = sshll.u32 [#allocation8], 4
      %s60 = int_to_ptr.vmem [resolvable:$true] %s59
      %65 = dma.hbm_to_vmem [thread:$0]  %s5, 1024, %s60, [#allocation9], 64, 64, 4
    $region25: #{fc_block_forward.1} parent=1 // pred_fallthru
      _
    // Predicated region
    $region26: #{fc_block_forward.1} parent=1 // pred_check
      _
    $region27: #{fc_block_forward.1} parent=1 // pred_check_branch
      %67 = sbr.rel (0) target = $region29
    $region28: #{fc_block_forward.1} parent=1 // pred_region
      _
    $region29: #{fc_block_forward.1} parent=1 // pred_fallthru
      _
    // Predicated region
    $region30: #{fc_block_forward.1} parent=1 // pred_check
      _
    $region31: #{fc_block_forward.1} parent=1 // pred_check_branch
      %69 = sbr.rel (0) target = $region33
    $region32: #{fc_block_forward.1} parent=1 // pred_region
      %70 = dma.done [#allocation3], 3200
    $region33: #{fc_block_forward.1} parent=1 // pred_fallthru
      _
    // Predicated region
    $region34: #{fc_block_forward.1} parent=1 // pred_check
      _
    $region35: #{fc_block_forward.1} parent=1 // pred_check_branch
      %72 = sbr.rel (0) target = $region37
    $region36: #{fc_block_forward.1} parent=1 // pred_region
      %73 = dma.done [#allocation6], 16
    $region37: #{fc_block_forward.1} parent=1 // pred_fallthru
      _
    // Predicated region
    $region38: #{fc_block_forward.1} parent=1 // pred_check
      _
    $region39: #{fc_block_forward.1} parent=1 // pred_check_branch
      %75 = sbr.rel (0) target = $region41
    $region40: #{fc_block_forward.1} parent=1 // pred_region
      %76 = dma.done [#allocation6], 1024
    $region41: #{fc_block_forward.1} parent=1 // pred_fallthru
      _
    // Predicated region
    $region42: #{fc_block_forward.1} parent=1 // pred_check
      _
    $region43: #{fc_block_forward.1} parent=1 // pred_check_branch
      %78 = sbr.rel (0) target = $region45
    $region44: #{fc_block_forward.1} parent=1 // pred_region
      %79 = dma.done [#allocation9], 1024
    $region45: #{fc_block_forward.1} parent=1 // pred_fallthru
      _
    %v81 = vld [vmem:[%s0] sm:$0xff]
    %v83 = vcombine.high %v81, %v81
    %v85 = vunpack.c.l.s4 1983009808
    %v86 = vunpack.c.0.s8 %v85
    %v87 = vlaneseq
    %v88 = vshrl.u32 %v87, 7
    %v89 = vsub.s32 %v86, %v88
    %v90 = vrot.slane %v81, %v89
    %v92 = vunpack.c.l.s4 1983009808
    %v93 = vunpack.c.0.s8 %v92
    %v94 = vlaneseq
    %v95 = vshrl.u32 %v94, 7
    %v96 = vsub.s32 %v93, %v95
    %v97 = vrot.slane %v83, %v96
    %v98 = vcombine.high %v90, %v90
    %v99 = vcombine.high %v97, %v97
    %v104 = vpack.c.bf16 %v90, %v90
    %v105 = vpack.c.bf16 %v98, %v98
    %v106 = vpack.c.bf16 %v97, %v97
    %v107 = vpack.c.bf16 %v99, %v99
    %v108 = vld [vmem:[#allocation2] sm:$0xf]
    %v109 = vld [vmem:[#allocation2 + $0x4] sm:$0xf]
    %v110 = vld [vmem:[#allocation2 + $0x8] sm:$0xf]
    %v111 = vld [vmem:[#allocation2 + $0xc] sm:$0xf]
    %v112 = vld [vmem:[#allocation2 + $0x10] sm:$0xf]
    %v113 = vld [vmem:[#allocation2 + $0x14] sm:$0xf]
    %v114 = vld [vmem:[#allocation2 + $0x18] sm:$0xf]
    %v115 = vld [vmem:[#allocation2 + $0x1c] sm:$0xf]
    %v116 = vld [vmem:[#allocation2 + $0x20] sm:$0xf]
    %v117 = vld [vmem:[#allocation2 + $0x24] sm:$0xf]
    %v118 = vld [vmem:[#allocation2 + $0x28] sm:$0xf]
    %v119 = vld [vmem:[#allocation2 + $0x2c] sm:$0xf]
    %v120 = vld [vmem:[#allocation2 + $0x30] sm:$0xf]
    %v121 = vld [vmem:[#allocation2 + $0x34] sm:$0xf]
    %v122 = vld [vmem:[#allocation2 + $0x38] sm:$0xf]
    %v123 = vld [vmem:[#allocation2 + $0x3c] sm:$0xf]
    %v124 = vld [vmem:[#allocation2 + $0x40] sm:$0xf]
    %v125 = vld [vmem:[#allocation2 + $0x44] sm:$0xf]
    %v126 = vld [vmem:[#allocation2 + $0x48] sm:$0xf]
    %v127 = vld [vmem:[#allocation2 + $0x4c] sm:$0xf]
    %v128 = vld [vmem:[#allocation2 + $0x50] sm:$0xf]
    %v129 = vld [vmem:[#allocation2 + $0x54] sm:$0xf]
    %v130 = vld [vmem:[#allocation2 + $0x58] sm:$0xf]
    %v131 = vld [vmem:[#allocation2 + $0x5c] sm:$0xf]
    %v132 = vld [vmem:[#allocation2 + $0x60] sm:$0xf]
    %v133 = vld [vmem:[#allocation2 + $0x64] sm:$0xf]
    %v134 = vld [vmem:[#allocation2 + $0x68] sm:$0xf]
    %v135 = vld [vmem:[#allocation2 + $0x6c] sm:$0xf]
    %v136 = vld [vmem:[#allocation2 + $0x70] sm:$0xf]
    %v137 = vld [vmem:[#allocation2 + $0x74] sm:$0xf]
    %v138 = vld [vmem:[#allocation2 + $0x78] sm:$0xf]
    %v139 = vld [vmem:[#allocation2 + $0x7c] sm:$0xf]
    %v140 = vld [vmem:[#allocation2 + $0x80] sm:$0xf]
    %v141 = vld [vmem:[#allocation2 + $0x84] sm:$0xf]
    %v142 = vld [vmem:[#allocation2 + $0x88] sm:$0xf]
    %v143 = vld [vmem:[#allocation2 + $0x8c] sm:$0xf]
    %v144 = vld [vmem:[#allocation2 + $0x90] sm:$0xf]
    %v145 = vld [vmem:[#allocation2 + $0x94] sm:$0xf]
    %v146 = vld [vmem:[#allocation2 + $0x98] sm:$0xf]
    %v147 = vld [vmem:[#allocation2 + $0x9c] sm:$0xf]
    %v148 = vld [vmem:[#allocation2 + $0xa0] sm:$0xf]
    %v149 = vld [vmem:[#allocation2 + $0xa4] sm:$0xf]
    %v150 = vld [vmem:[#allocation2 + $0xa8] sm:$0xf]
    %v151 = vld [vmem:[#allocation2 + $0xac] sm:$0xf]
    %v152 = vld [vmem:[#allocation2 + $0xb0] sm:$0xf]
    %v153 = vld [vmem:[#allocation2 + $0xb4] sm:$0xf]
    %v154 = vld [vmem:[#allocation2 + $0xb8] sm:$0xf]
    %v155 = vld [vmem:[#allocation2 + $0xbc] sm:$0xf]
    %v156 = vld [vmem:[#allocation2 + $0xc0] sm:$0xf]
    %v157 = vld [vmem:[#allocation2 + $0xc4] sm:$0xf]
    %v158 = vld [vmem:[#allocation5] sm:$0x1]
    %v160 = vlaneseq
    %v161 = vshrl.u32 %v160, 7
    %v162 = vsub.s32 0, %v161
    %v163 = vrot.slane %v158, %v162
    %v215 = vunpack.c.l.b16 %v108
    %v216 = vunpack.c.l.b16 %v109
    %v217 = vunpack.c.l.b16 %v110
    %v218 = vunpack.c.l.b16 %v111
    %v219 = vunpack.c.l.b16 %v112
    %v220 = vunpack.c.l.b16 %v113
    %v221 = vunpack.c.l.b16 %v114
    %v222 = vunpack.c.l.b16 %v115
    %v223 = vunpack.c.l.b16 %v116
    %v224 = vunpack.c.l.b16 %v117
    %v225 = vunpack.c.l.b16 %v118
    %v226 = vunpack.c.l.b16 %v119
    %v227 = vunpack.c.l.b16 %v120
    %v228 = vunpack.c.l.b16 %v121
    %v229 = vunpack.c.l.b16 %v122
    %v230 = vunpack.c.l.b16 %v123
    %v231 = vunpack.c.l.b16 %v124
    %v232 = vunpack.c.l.b16 %v125
    %v233 = vunpack.c.l.b16 %v126
    %v234 = vunpack.c.l.b16 %v127
    %v235 = vunpack.c.l.b16 %v128
    %v236 = vunpack.c.l.b16 %v129
    %v237 = vunpack.c.l.b16 %v130
    %v238 = vunpack.c.l.b16 %v131
    %v239 = vunpack.c.l.b16 %v132
    %v240 = vunpack.c.l.b16 %v133
    %v241 = vunpack.c.l.b16 %v134
    %v242 = vunpack.c.l.b16 %v135
    %v243 = vunpack.c.l.b16 %v136
    %v244 = vunpack.c.l.b16 %v137
    %v245 = vunpack.c.l.b16 %v138
    %v246 = vunpack.c.l.b16 %v139
    %v247 = vunpack.c.l.b16 %v140
    %v248 = vunpack.c.l.b16 %v141
    %v249 = vunpack.c.l.b16 %v142
    %v250 = vunpack.c.l.b16 %v143
    %v251 = vunpack.c.l.b16 %v144
    %v252 = vunpack.c.l.b16 %v145
    %v253 = vunpack.c.l.b16 %v146
    %v254 = vunpack.c.l.b16 %v147
    %v255 = vunpack.c.l.b16 %v148
    %v256 = vunpack.c.l.b16 %v149
    %v257 = vunpack.c.l.b16 %v150
    %v258 = vunpack.c.l.b16 %v151
    %v259 = vunpack.c.l.b16 %v152
    %v260 = vunpack.c.l.b16 %v153
    %v261 = vunpack.c.l.b16 %v154
    %v262 = vunpack.c.l.b16 %v155
    %v263 = vunpack.c.l.b16 %v156
    %v264 = vunpack.c.l.b16 %v157
    %v265 = vpack.c.b16 %v216, %v215
    %v266 = vpack.c.b16 %v218, %v217
    %v267 = vpack.c.b16 %v220, %v219
    %v268 = vpack.c.b16 %v222, %v221
    %v269 = vpack.c.b16 %v224, %v223
    %v270 = vpack.c.b16 %v226, %v225
    %v271 = vpack.c.b16 %v228, %v227
    %v272 = vpack.c.b16 %v230, %v229
    %v273 = vpack.c.b16 %v232, %v231
    %v274 = vpack.c.b16 %v234, %v233
    %v275 = vpack.c.b16 %v236, %v235
    %v276 = vpack.c.b16 %v238, %v237
    %v277 = vpack.c.b16 %v240, %v239
    %v278 = vpack.c.b16 %v242, %v241
    %v279 = vpack.c.b16 %v244, %v243
    %v280 = vpack.c.b16 %v246, %v245
    %v281 = vpack.c.b16 %v248, %v247
    %v282 = vpack.c.b16 %v250, %v249
    %v283 = vpack.c.b16 %v252, %v251
    %v284 = vpack.c.b16 %v254, %v253
    %v285 = vpack.c.b16 %v256, %v255
    %v286 = vpack.c.b16 %v258, %v257
    %v287 = vpack.c.b16 %v260, %v259
    %v288 = vpack.c.b16 %v262, %v261
    %v289 = vpack.c.b16 %v264, %v263
    %vm315 = vcmask 130048
    %v317 = vsel %vm315, %v107, 0
    %319 = vmatprep.subr.bf16.mxu0 0
    %320 = vmatpush1.bf16.msra.mxu0 %v265
    %321 = vmatprep.subr.bf16.mxu0 0
    %322 = vmatpush1.bf16.msra.mxu0 %v266
    %323 = vmatprep.subr.bf16.mxu0 0
    %324 = vmatpush1.bf16.msra.mxu0 %v267
    %325 = vmatprep.subr.bf16.mxu0 0
    %326 = vmatpush1.bf16.msra.mxu0 %v268
    %327 = vmatprep.subr.bf16.mxu0 0
    %328 = vmatpush1.bf16.msra.mxu0 %v269
    %329 = vmatprep.subr.bf16.mxu0 0
    %330 = vmatpush1.bf16.msra.mxu0 %v270
    %331 = vmatprep.subr.bf16.mxu0 0
    %332 = vmatpush1.bf16.msra.mxu0 %v271
    %333 = vmatprep.subr.bf16.mxu0 0
    %334 = vmatpush1.bf16.msra.mxu0 %v272
    %335 = vmatprep.subr.bf16.mxu0 0
    %336 = vmatpush1.bf16.msra.mxu0 %v273
    %337 = vmatprep.subr.bf16.mxu0 0
    %338 = vmatpush1.bf16.msra.mxu0 %v274
    %339 = vmatprep.subr.bf16.mxu0 0
    %340 = vmatpush1.bf16.msra.mxu0 %v275
    %341 = vmatprep.subr.bf16.mxu0 0
    %342 = vmatpush1.bf16.msra.mxu0 %v276
    %343 = vmatprep.subr.bf16.mxu0 0
    %344 = vmatpush1.bf16.msra.mxu0 %v277
    %345 = vmatprep.subr.bf16.mxu0 0
    %346 = vmatpush1.bf16.msra.mxu0 %v278
    %347 = vmatprep.subr.bf16.mxu0 0
    %348 = vmatpush1.bf16.msra.mxu0 %v279
    %349 = vmatprep.subr.bf16.mxu0 0
    %350 = vmatpush1.bf16.msra.mxu0 %v280
    %351 = vmatprep.mubr.bf16.mxu0 %v105
    %352 = vmatmul.mubr.bf16.gmra.mrb[0].mxu0 %v104
    %v353 = vpop.f32.mrb[0].mxu0
    %v354 = vadd.f32 %v163, %v353
    %v355 = vpop.f32.mrb[0].mxu0
    %v356 = vpop.f32.mrb[0].mxu0
    %v357 = vpop.f32.mrb[0].mxu0
    %358 = vdwg.mxu0
    %359 = vmatprep.subr.bf16.mxu0 0
    %360 = vmatpush1.bf16.msra.mxu0 %v281
    %361 = vmatprep.subr.bf16.mxu0 0
    %362 = vmatpush1.bf16.msra.mxu0 %v282
    %363 = vmatprep.subr.bf16.mxu0 0
    %364 = vmatpush1.bf16.msra.mxu0 %v283
    %365 = vmatprep.subr.bf16.mxu0 0
    %366 = vmatpush1.bf16.msra.mxu0 %v284
    %367 = vmatprep.subr.bf16.mxu0 0
    %368 = vmatpush1.bf16.msra.mxu0 %v285
    %369 = vmatprep.subr.bf16.mxu0 0
    %370 = vmatpush1.bf16.msra.mxu0 %v286
    %371 = vmatprep.subr.bf16.mxu0 0
    %372 = vmatpush1.bf16.msra.mxu0 %v287
    %373 = vmatprep.subr.bf16.mxu0 0
    %374 = vmatpush1.bf16.msra.mxu0 %v288
    %375 = vmatprep.subr.bf16.mxu0 0
    %376 = vmatpush1.bf16.msra.mxu0 %v289
    %377 = vmatprep.subr.bf16.mxu0 0
    %378 = vmatpush1.bf16.msra.mxu0 0
    %379 = vmatprep.subr.bf16.mxu0 0
    %380 = vmatpush1.bf16.msra.mxu0 0
    %381 = vmatprep.subr.bf16.mxu0 0
    %382 = vmatpush1.bf16.msra.mxu0 0
    %383 = vmatprep.subr.bf16.mxu0 0
    %384 = vmatpush1.bf16.msra.mxu0 0
    %385 = vmatprep.subr.bf16.mxu0 0
    %386 = vmatpush1.bf16.msra.mxu0 0
    %387 = vmatprep.subr.bf16.mxu0 0
    %388 = vmatpush1.bf16.msra.mxu0 0
    %389 = vmatprep.subr.bf16.mxu0 0
    %390 = vmatpush1.bf16.msra.mxu0 0
    %391 = vmatprep.mubr.bf16.mxu0 %v317
    %392 = vmatmul.mubr.bf16.gmra.mrb[0].mxu0 %v106
    %v393 = vpop.f32.mrb[0].mxu0
    %v394 = vadd.f32 %v354, %v393
    %v395 = vpop.f32.mrb[0].mxu0
    %v396 = vpop.f32.mrb[0].mxu0
    %v397 = vpop.f32.mrb[0].mxu0
    %398 = vdwg.mxu0
    %v399 = vmax.f32 %v394, 0.0
    %v400 = vpack.c.bf16 %v399, %v399
    %v401 = vld [vmem:[#allocation7] sm:$0xf]
    %v402 = vld [vmem:[#allocation7 + $0x4] sm:$0xf]
    %v403 = vld [vmem:[#allocation7 + $0x8] sm:$0xf]
    %v404 = vld [vmem:[#allocation7 + $0xc] sm:$0xf]
    %v405 = vld [vmem:[#allocation7 + $0x10] sm:$0xf]
    %v406 = vld [vmem:[#allocation7 + $0x14] sm:$0xf]
    %v407 = vld [vmem:[#allocation7 + $0x18] sm:$0xf]
    %v408 = vld [vmem:[#allocation7 + $0x1c] sm:$0xf]
    %v409 = vld [vmem:[#allocation7 + $0x20] sm:$0xf]
    %v410 = vld [vmem:[#allocation7 + $0x24] sm:$0xf]
    %v411 = vld [vmem:[#allocation7 + $0x28] sm:$0xf]
    %v412 = vld [vmem:[#allocation7 + $0x2c] sm:$0xf]
    %v413 = vld [vmem:[#allocation7 + $0x30] sm:$0xf]
    %v414 = vld [vmem:[#allocation7 + $0x34] sm:$0xf]
    %v415 = vld [vmem:[#allocation7 + $0x38] sm:$0xf]
    %v416 = vld [vmem:[#allocation7 + $0x3c] sm:$0xf]
    %v417 = vld [vmem:[%s4] sm:$0x1]
    %v419 = vlaneseq
    %v420 = vshrl.u32 %v419, 7
    %v421 = vsub.s32 0, %v420
    %v422 = vrot.slane %v417, %v421
    %v440 = vunpack.c.l.b16 %v401
    %v441 = vunpack.c.l.b16 %v402
    %v442 = vunpack.c.l.b16 %v403
    %v443 = vunpack.c.l.b16 %v404
    %v444 = vunpack.c.l.b16 %v405
    %v445 = vunpack.c.l.b16 %v406
    %v446 = vunpack.c.l.b16 %v407
    %v447 = vunpack.c.l.b16 %v408
    %v448 = vunpack.c.l.b16 %v409
    %v449 = vunpack.c.l.b16 %v410
    %v450 = vunpack.c.l.b16 %v411
    %v451 = vunpack.c.l.b16 %v412
    %v452 = vunpack.c.l.b16 %v413
    %v453 = vunpack.c.l.b16 %v414
    %v454 = vunpack.c.l.b16 %v415
    %v455 = vunpack.c.l.b16 %v416
    %v456 = vpack.c.b16 %v441, %v440
    %v457 = vpack.c.b16 %v443, %v442
    %v458 = vpack.c.b16 %v445, %v444
    %v459 = vpack.c.b16 %v447, %v446
    %v460 = vpack.c.b16 %v449, %v448
    %v461 = vpack.c.b16 %v451, %v450
    %v462 = vpack.c.b16 %v453, %v452
    %v463 = vpack.c.b16 %v455, %v454
    %472 = vmatprep.subr.bf16.mxu0 0
    %473 = vmatpush1.bf16.msra.mxu0 %v456
    %474 = vmatprep.subr.bf16.mxu0 0
    %475 = vmatpush1.bf16.msra.mxu0 %v457
    %476 = vmatprep.subr.bf16.mxu0 0
    %477 = vmatpush1.bf16.msra.mxu0 %v458
    %478 = vmatprep.subr.bf16.mxu0 0
    %479 = vmatpush1.bf16.msra.mxu0 %v459
    %480 = vmatprep.subr.bf16.mxu0 0
    %481 = vmatpush1.bf16.msra.mxu0 %v460
    %482 = vmatprep.subr.bf16.mxu0 0
    %483 = vmatpush1.bf16.msra.mxu0 %v461
    %484 = vmatprep.subr.bf16.mxu0 0
    %485 = vmatpush1.bf16.msra.mxu0 %v462
    %486 = vmatprep.subr.bf16.mxu0 0
    %487 = vmatpush1.bf16.msra.mxu0 %v463
    %488 = vmatprep.subr.bf16.mxu0 0
    %489 = vmatpush1.bf16.msra.mxu0 0
    %490 = vmatprep.subr.bf16.mxu0 0
    %491 = vmatpush1.bf16.msra.mxu0 0
    %492 = vmatprep.subr.bf16.mxu0 0
    %493 = vmatpush1.bf16.msra.mxu0 0
    %494 = vmatprep.subr.bf16.mxu0 0
    %495 = vmatpush1.bf16.msra.mxu0 0
    %496 = vmatprep.subr.bf16.mxu0 0
    %497 = vmatpush1.bf16.msra.mxu0 0
    %498 = vmatprep.subr.bf16.mxu0 0
    %499 = vmatpush1.bf16.msra.mxu0 0
    %500 = vmatprep.subr.bf16.mxu0 0
    %501 = vmatpush1.bf16.msra.mxu0 0
    %502 = vmatprep.subr.bf16.mxu0 0
    %503 = vmatpush1.bf16.msra.mxu0 0
    %504 = vmatprep.mubr.bf16.mxu0 0
    %505 = vmatmul.mubr.bf16.gmra.mrb[0].mxu0 %v400
    %v506 = vpop.f32.mrb[0].mxu0
    %v507 = vadd.f32 %v422, %v506
    %v508 = vpop.f32.mrb[0].mxu0
    %v509 = vpop.f32.mrb[0].mxu0
    %v510 = vpop.f32.mrb[0].mxu0
    %511 = vdwg.mxu0
    %v512 = vmax.f32 %v507, 0.0
    %v513 = vpack.c.bf16 %v512, %v512
    %v514 = vld [vmem:[#allocation8] sm:$0xf]
    %v515 = vld [vmem:[#allocation8 + $0x4] sm:$0xf]
    %v516 = vld [vmem:[#allocation8 + $0x8] sm:$0xf]
    %v517 = vld [vmem:[#allocation8 + $0xc] sm:$0xf]
    %v518 = vld [vmem:[#allocation8 + $0x10] sm:$0xf]
    %v519 = vld [vmem:[#allocation8 + $0x14] sm:$0xf]
    %v520 = vld [vmem:[#allocation8 + $0x18] sm:$0xf]
    %v521 = vld [vmem:[#allocation8 + $0x1c] sm:$0xf]
    %v522 = vld [vmem:[#allocation8 + $0x20] sm:$0xf]
    %v523 = vld [vmem:[#allocation8 + $0x24] sm:$0xf]
    %v524 = vld [vmem:[#allocation8 + $0x28] sm:$0xf]
    %v525 = vld [vmem:[#allocation8 + $0x2c] sm:$0xf]
    %v526 = vld [vmem:[#allocation8 + $0x30] sm:$0xf]
    %v527 = vld [vmem:[#allocation8 + $0x34] sm:$0xf]
    %v528 = vld [vmem:[#allocation8 + $0x38] sm:$0xf]
    %v529 = vld [vmem:[#allocation8 + $0x3c] sm:$0xf]
    %v530 = vld [vmem:[%s6] sm:$0x1]
    %v532 = vlaneseq
    %v533 = vshrl.u32 %v532, 7
    %v534 = vsub.s32 0, %v533
    %v535 = vrot.slane %v530, %v534
    %v553 = vunpack.c.l.b16 %v514
    %v554 = vunpack.c.l.b16 %v515
    %v555 = vunpack.c.l.b16 %v516
    %v556 = vunpack.c.l.b16 %v517
    %v557 = vunpack.c.l.b16 %v518
    %v558 = vunpack.c.l.b16 %v519
    %v559 = vunpack.c.l.b16 %v520
    %v560 = vunpack.c.l.b16 %v521
    %v561 = vunpack.c.l.b16 %v522
    %v562 = vunpack.c.l.b16 %v523
    %v563 = vunpack.c.l.b16 %v524
    %v564 = vunpack.c.l.b16 %v525
    %v565 = vunpack.c.l.b16 %v526
    %v566 = vunpack.c.l.b16 %v527
    %v567 = vunpack.c.l.b16 %v528
    %v568 = vunpack.c.l.b16 %v529
    %v569 = vpack.c.b16 %v554, %v553
    %v570 = vpack.c.b16 %v556, %v555
    %v571 = vpack.c.b16 %v558, %v557
    %v572 = vpack.c.b16 %v560, %v559
    %v573 = vpack.c.b16 %v562, %v561
    %v574 = vpack.c.b16 %v564, %v563
    %v575 = vpack.c.b16 %v566, %v565
    %v576 = vpack.c.b16 %v568, %v567
    %585 = vmatprep.subr.bf16.mxu0 0
    %586 = vmatpush1.bf16.msra.mxu0 %v569
    %587 = vmatprep.subr.bf16.mxu0 0
    %588 = vmatpush1.bf16.msra.mxu0 %v570
    %589 = vmatprep.subr.bf16.mxu0 0
    %590 = vmatpush1.bf16.msra.mxu0 %v571
    %591 = vmatprep.subr.bf16.mxu0 0
    %592 = vmatpush1.bf16.msra.mxu0 %v572
    %593 = vmatprep.subr.bf16.mxu0 0
    %594 = vmatpush1.bf16.msra.mxu0 %v573
    %595 = vmatprep.subr.bf16.mxu0 0
    %596 = vmatpush1.bf16.msra.mxu0 %v574
    %597 = vmatprep.subr.bf16.mxu0 0
    %598 = vmatpush1.bf16.msra.mxu0 %v575
    %599 = vmatprep.subr.bf16.mxu0 0
    %600 = vmatpush1.bf16.msra.mxu0 %v576
    %601 = vmatprep.subr.bf16.mxu0 0
    %602 = vmatpush1.bf16.msra.mxu0 0
    %603 = vmatprep.subr.bf16.mxu0 0
    %604 = vmatpush1.bf16.msra.mxu0 0
    %605 = vmatprep.subr.bf16.mxu0 0
    %606 = vmatpush1.bf16.msra.mxu0 0
    %607 = vmatprep.subr.bf16.mxu0 0
    %608 = vmatpush1.bf16.msra.mxu0 0
    %609 = vmatprep.subr.bf16.mxu0 0
    %610 = vmatpush1.bf16.msra.mxu0 0
    %611 = vmatprep.subr.bf16.mxu0 0
    %612 = vmatpush1.bf16.msra.mxu0 0
    %613 = vmatprep.subr.bf16.mxu0 0
    %614 = vmatpush1.bf16.msra.mxu0 0
    %615 = vmatprep.subr.bf16.mxu0 0
    %616 = vmatpush1.bf16.msra.mxu0 0
    %617 = vmatprep.mubr.bf16.mxu0 0
    %618 = vmatmul.mubr.bf16.gmra.mrb[0].mxu0 %v513
    %v619 = vpop.f32.mrb[0].mxu0
    %v620 = vadd.f32 %v535, %v619
    %v621 = vpop.f32.mrb[0].mxu0
    %v622 = vpop.f32.mrb[0].mxu0
    %v623 = vpop.f32.mrb[0].mxu0
    %624 = vdwg.mxu0
    %vm625 = vcmask 74752
    %626 = vst.msk [vmem:[#allocation10] sm:$0x3] %vm625, %v620
    // Predicated region
    $region46: #{fc_block_forward.1} parent=1 // pred_check
      _
    $region47: #{fc_block_forward.1} parent=1 // pred_check_branch
      %628 = sbr.rel (0) target = $region49
    $region48: #{fc_block_forward.1} parent=1 // pred_region
      %s630 = ssub.s32 32, 32
      %631 = vsyncadd [#allocation4], %s630
      %s633 = sshll.u32 [#allocation10], 4
      %s634 = int_to_ptr.vmem [resolvable:$true] %s633
      %636 = dma.vmem_to_hbm [thread:$0]  %s634, 32, %s7, [#allocation4]
    $region49: #{fc_block_forward.1} parent=1 // pred_fallthru
      _
    // Predicated region
    $region50: #{fc_block_forward.1} parent=1 // pred_check
      _
    $region51: #{fc_block_forward.1} parent=1 // pred_check_branch
      %638 = sbr.rel (0) target = $region53
    $region52: #{fc_block_forward.1} parent=1 // pred_region
      %639 = dma.done [#allocation4], 32
    $region53: #{fc_block_forward.1} parent=1 // pred_fallthru
      _
    %640 = vsyncpa [#allocation3], 1
    %641 = vsyncpa [#allocation6], 1
    %642 = vsyncpa [#allocation9], 1
    %643 = vsyncpa [#allocation4], 1

</llo_original>
